<compile_context>
chip_gen: v5e
topology: v5e:2x2
jax: 0.10.0
libtpu: 0.0.40
codegen_flags: <defaults>
</compile_context>

<pallas_src>
import functools

import jax
import jax.numpy as jnp
from jax.experimental import pallas as pl
from jax.experimental.pallas import tpu as pltpu


# ----------------------------- Pallas kernel -------------------------------
def _make_conv_kernel(KH, KW, stride, OH, OW, WPs, C, OC, L):
    """Builds the per-batch-element fused-conv kernel (all sizes static)."""
    K = KH * KW * C

    def kernel(x_ref, w_ref, b_ref, o_ref, p_ref):
        # x_ref: (s, s, C, HPs*WPs) bf16  phase-split, flattened spatial plane:
        #        x_ref[pi, pj, c, r*WPs + q] == x_pad[c, r*s + pi, q*s + pj]
        # w_ref: (OC, K) bf16             w[oc, (ki*KW + kj)*C + c]
        # b_ref: (OC, 1) f32
        # o_ref: (OC, OH, OW) f32         NCHW block of one batch element
        # p_ref: (K, L) bf16 VMEM scratch patch matrix, L = (OH-1)*WPs + OW
        #
        # Assemble the patch matrix: tap (ki, kj) contributes to output pixel
        # (oh, ow) the flattened-plane element at
        #     (oh + ri)*WPs + (ow + rj) = (ri*WPs + rj) + (oh*WPs + ow),
        # i.e. one contiguous span of length L per (tap, channel) — plain
        # static slice loads/stores, no reshapes.
        for ki in range(KH):
            pi, ri = ki % stride, ki // stride
            for kj in range(KW):
                pj, rj = kj % stride, kj // stride
                tap = ki * KW + kj
                off = ri * WPs + rj
                p_ref[tap * C:(tap + 1) * C, :] = x_ref[pi, pj, :, off:off + L]

        # Single MXU pass: (OC, K) @ (K, L), bf16 x bf16 -> f32 accumulate.
        acc = jnp.dot(w_ref[...], p_ref[...],
                      preferred_element_type=jnp.float32)
        acc = acc + b_ref[...]                 # bias broadcast over lane dim

        # Columns oh*WPs + ow (ow < OW) are the valid output pixels; write them
        # straight into the NCHW output block (lane dim = OW).
        for oh in range(OH):
            o_ref[:, oh, :] = acc[:, oh * WPs:oh * WPs + OW]

    return kernel


# ------------------------------ JAX wrapper ---------------------------------
@functools.partial(jax.jit, static_argnames=("kernel_size", "stride"))
def conv_layer_forward(x, weight, bias, *, kernel_size, stride):
    """ConvLayer.forward: ReflectionPad2d(k//2) -> Conv2d(k, stride).

    x: (N, C, H, W) f32, weight: (OC, C, KH, KW), bias: (OC,). Returns NCHW.
    """
    N, C, H, W = x.shape
    OC, _, KH, KW = weight.shape
    assert kernel_size % 2 == 1, "even kernel_size not supported (reflect pad)"
    pad = kernel_size // 2
    assert pad <= H - 1 and pad <= W - 1, "reflection pad larger than input"
    s = stride

    # Reflection pad (matches torch.nn.ReflectionPad2d for odd kernel_size).
    xp = jnp.pad(x, ((0, 0), (0, 0), (pad, pad), (pad, pad)), mode="reflect")
    HP, WP = H + 2 * pad, W + 2 * pad
    OH = (HP - KH) // s + 1
    OW = (WP - KW) // s + 1

    # Pad H/W up to stride multiples (padding never read by valid columns),
    # stride-phase split keeping channel ahead of the spatial plane, flatten
    # (HPs, WPs) into the lane dim, cast bf16 — all fused into one XLA pass.
    ph, pw = (-HP) % s, (-WP) % s
    if ph or pw:
        xp = jnp.pad(xp, ((0, 0), (0, 0), (0, ph), (0, pw)))
    HPs, WPs = (HP + ph) // s, (WP + pw) // s
    xph = xp.reshape(N, C, HPs, s, WPs, s).transpose(0, 3, 5, 1, 2, 4)
    xph = xph.reshape(N, s, s, C, HPs * WPs).astype(jnp.bfloat16)

    K = KH * KW * C
    L = (OH - 1) * WPs + OW        # every tap span stays inside HPs*WPs

    # Weight slab (OC, K), K ordered (ki, kj, c) to match the patch rows; bf16.
    w2 = weight.transpose(0, 2, 3, 1).reshape(OC, K).astype(jnp.bfloat16)
    b2 = bias.reshape(OC, 1).astype(jnp.float32)

    kernel = _make_conv_kernel(KH, KW, s, OH, OW, WPs, C, OC, L)

    flops = 2 * N * OC * K * OH * OW
    bytes_accessed = (xph.size * 2 + w2.size * 2 + b2.size * 4
                      + N * OC * OH * OW * 4)

    out = pl.pallas_call(
        kernel,
        out_shape=jax.ShapeDtypeStruct((N, OC, OH, OW), jnp.float32),
        grid=(N,),
        in_specs=[
            # Whole phase-split image of one batch element, resident in VMEM.
            pl.BlockSpec((None, s, s, C, HPs * WPs),
                         lambda n: (n, 0, 0, 0, 0)),
            # Grid-invariant weight / bias: fetched once, stay resident.
            pl.BlockSpec((OC, K), lambda n: (0, 0)),
            pl.BlockSpec((OC, 1), lambda n: (0, 0)),
        ],
        out_specs=pl.BlockSpec((None, OC, OH, OW), lambda n: (n, 0, 0, 0)),
        scratch_shapes=[pltpu.VMEM((K, L), jnp.bfloat16)],
        compiler_params=pltpu.CompilerParams(
            dimension_semantics=("parallel",),
            vmem_limit_bytes=32 * 1024 * 1024),
        cost_estimate=pl.CostEstimate(
            flops=flops, transcendentals=0, bytes_accessed=bytes_accessed),
    )(xph, w2, b2)
    return out


# ------------------------------- main ---------------------------------------
if __name__ == "__main__":
    # ConvLayer(in_channels=4, out_channels=8, kernel_size=3, stride=2)
    in_channels, out_channels, kernel_size, stride = 4, 8, 3, 2
    N, H, W = 2, 16, 16

    key = jax.random.PRNGKey(0)
    kx, kw_, kb = jax.random.split(key, 3)
    x = jax.random.normal(kx, (N, in_channels, H, W), dtype=jnp.float32)
    weight = jax.random.normal(
        kw_, (out_channels, in_channels, kernel_size, kernel_size),
        dtype=jnp.float32) * 0.1
    bias = jax.random.normal(kb, (out_channels,), dtype=jnp.float32) * 0.1

    out = conv_layer_forward(x, weight, bias,
                             kernel_size=kernel_size, stride=stride)
    out = jax.block_until_ready(out)

    # Reference: same reflection pad + VALID conv with operands rounded to
    # bf16 exactly as the kernel sees them (both sides accumulate in f32).
    pad = kernel_size // 2
    x_bf = x.astype(jnp.bfloat16).astype(jnp.float32)
    w_bf = weight.astype(jnp.bfloat16).astype(jnp.float32)
    xp_ref = jnp.pad(x_bf, ((0, 0), (0, 0), (pad, pad), (pad, pad)),
                     mode="reflect")
    ref = jax.lax.conv_general_dilated(
        xp_ref, w_bf, window_strides=(stride, stride), padding="VALID",
        dimension_numbers=("NCHW", "OIHW", "NCHW"),
        precision=jax.lax.Precision.HIGHEST) + bias[None, :, None, None]

    assert out.shape == ref.shape, (out.shape, ref.shape)
    max_err = float(jnp.max(jnp.abs(out - ref)))
    assert jnp.allclose(out, ref, atol=5e-3, rtol=5e-3), max_err

    print("KERNEL_OK")
</pallas_src>

<mosaic_0001>
module attributes {stable_mosaic.version = 11 : i64} {
  func.func @kernel(%arg0: i32, %arg1: memref<1x2x2x4x81xbf16, #tpu.memory_space<vmem>>, %arg2: memref<8x36xbf16, #tpu.memory_space<vmem>>, %arg3: memref<8x1xf32, #tpu.memory_space<vmem>>, %arg4: memref<1x8x8x8xf32, #tpu.memory_space<vmem>>, %arg5: memref<36x71xbf16, #tpu.memory_space<vmem>>) attributes {dimension_semantics = [#tpu.dimension_semantics<parallel>], iteration_bounds = array<i64: 2>, scalar_prefetch = 0 : i64, scratch_operands = 1 : i64, tpu.core_type = #tpu.core_type<tc>, window_params = [{transform_indices = @transform_0, window_bounds = array<i64: 1, 2, 2, 4, 81>}, {pipeline_mode = #tpu.pipeline_mode<synchronous>, transform_indices = @transform_1, window_bounds = array<i64: 8, 36>}, {pipeline_mode = #tpu.pipeline_mode<synchronous>, transform_indices = @transform_2, window_bounds = array<i64: 8, 1>}, {transform_indices = @transform_3, window_bounds = array<i64: 1, 8, 8, 8>}]} {
    %c0 = arith.constant 0 : index
    %c0_0 = arith.constant 0 : index
    %c0_1 = arith.constant 0 : index
    %c0_2 = arith.constant 0 : index
    %c0_3 = arith.constant 0 : index
    %0 = vector.load %arg1[%c0, %c0_0, %c0_1, %c0_2, %c0_3] : memref<1x2x2x4x81xbf16, #tpu.memory_space<vmem>>, vector<1x1x1x4x71xbf16>
    %1 = vector.shape_cast %0 : vector<1x1x1x4x71xbf16> to vector<4x71xbf16>
    %c0_4 = arith.constant 0 : index
    %c0_5 = arith.constant 0 : index
    %2 = vector.load %arg5[%c0_4, %c0_5] : memref<36x71xbf16, #tpu.memory_space<vmem>>, vector<4x71xbf16>
    tpu.vector_store %arg5[%c0_4, %c0_5], %1 {strides = array<i32>} : memref<36x71xbf16, #tpu.memory_space<vmem>>, vector<4x71xbf16>,
    %c0_6 = arith.constant 0 : index
    %c0_7 = arith.constant 0 : index
    %c1 = arith.constant 1 : index
    %c0_8 = arith.constant 0 : index
    %c0_9 = arith.constant 0 : index
    %3 = vector.load %arg1[%c0_6, %c0_7, %c1, %c0_8, %c0_9] : memref<1x2x2x4x81xbf16, #tpu.memory_space<vmem>>, vector<1x1x1x4x71xbf16>
    %4 = vector.shape_cast %3 : vector<1x1x1x4x71xbf16> to vector<4x71xbf16>
    %c4 = arith.constant 4 : index
    %c0_10 = arith.constant 0 : index
    %5 = vector.load %arg5[%c4, %c0_10] : memref<36x71xbf16, #tpu.memory_space<vmem>>, vector<4x71xbf16>
    tpu.vector_store %arg5[%c4, %c0_10], %4 {strides = array<i32>} : memref<36x71xbf16, #tpu.memory_space<vmem>>, vector<4x71xbf16>,
    %c0_11 = arith.constant 0 : index
    %c0_12 = arith.constant 0 : index
    %c0_13 = arith.constant 0 : index
    %c0_14 = arith.constant 0 : index
    %c1_15 = arith.constant 1 : index
    %6 = vector.load %arg1[%c0_11, %c0_12, %c0_13, %c0_14, %c1_15] : memref<1x2x2x4x81xbf16, #tpu.memory_space<vmem>>, vector<1x1x1x4x71xbf16>
    %7 = vector.shape_cast %6 : vector<1x1x1x4x71xbf16> to vector<4x71xbf16>
    %c8 = arith.constant 8 : index
    %c0_16 = arith.constant 0 : index
    %8 = vector.load %arg5[%c8, %c0_16] : memref<36x71xbf16, #tpu.memory_space<vmem>>, vector<4x71xbf16>
    tpu.vector_store %arg5[%c8, %c0_16], %7 {strides = array<i32>} : memref<36x71xbf16, #tpu.memory_space<vmem>>, vector<4x71xbf16>,
    %c0_17 = arith.constant 0 : index
    %c1_18 = arith.constant 1 : index
    %c0_19 = arith.constant 0 : index
    %c0_20 = arith.constant 0 : index
    %c0_21 = arith.constant 0 : index
    %9 = vector.load %arg1[%c0_17, %c1_18, %c0_19, %c0_20, %c0_21] : memref<1x2x2x4x81xbf16, #tpu.memory_space<vmem>>, vector<1x1x1x4x71xbf16>
    %10 = vector.shape_cast %9 : vector<1x1x1x4x71xbf16> to vector<4x71xbf16>
    %c12 = arith.constant 12 : index
    %c0_22 = arith.constant 0 : index
    %11 = vector.load %arg5[%c12, %c0_22] : memref<36x71xbf16, #tpu.memory_space<vmem>>, vector<4x71xbf16>
    tpu.vector_store %arg5[%c12, %c0_22], %10 {strides = array<i32>} : memref<36x71xbf16, #tpu.memory_space<vmem>>, vector<4x71xbf16>,
    %c0_23 = arith.constant 0 : index
    %c1_24 = arith.constant 1 : index
    %c1_25 = arith.constant 1 : index
    %c0_26 = arith.constant 0 : index
    %c0_27 = arith.constant 0 : index
    %12 = vector.load %arg1[%c0_23, %c1_24, %c1_25, %c0_26, %c0_27] : memref<1x2x2x4x81xbf16, #tpu.memory_space<vmem>>, vector<1x1x1x4x71xbf16>
    %13 = vector.shape_cast %12 : vector<1x1x1x4x71xbf16> to vector<4x71xbf16>
    %c16 = arith.constant 16 : index
    %c0_28 = arith.constant 0 : index
    %14 = vector.load %arg5[%c16, %c0_28] : memref<36x71xbf16, #tpu.memory_space<vmem>>, vector<4x71xbf16>
    tpu.vector_store %arg5[%c16, %c0_28], %13 {strides = array<i32>} : memref<36x71xbf16, #tpu.memory_space<vmem>>, vector<4x71xbf16>,
    %c0_29 = arith.constant 0 : index
    %c1_30 = arith.constant 1 : index
    %c0_31 = arith.constant 0 : index
    %c0_32 = arith.constant 0 : index
    %c1_33 = arith.constant 1 : index
    %15 = vector.load %arg1[%c0_29, %c1_30, %c0_31, %c0_32, %c1_33] : memref<1x2x2x4x81xbf16, #tpu.memory_space<vmem>>, vector<1x1x1x4x71xbf16>
    %16 = vector.shape_cast %15 : vector<1x1x1x4x71xbf16> to vector<4x71xbf16>
    %c20 = arith.constant 20 : index
    %c0_34 = arith.constant 0 : index
    %17 = vector.load %arg5[%c20, %c0_34] : memref<36x71xbf16, #tpu.memory_space<vmem>>, vector<4x71xbf16>
    tpu.vector_store %arg5[%c20, %c0_34], %16 {strides = array<i32>} : memref<36x71xbf16, #tpu.memory_space<vmem>>, vector<4x71xbf16>,
    %c0_35 = arith.constant 0 : index
    %c0_36 = arith.constant 0 : index
    %c0_37 = arith.constant 0 : index
    %c0_38 = arith.constant 0 : index
    %c9 = arith.constant 9 : index
    %18 = vector.load %arg1[%c0_35, %c0_36, %c0_37, %c0_38, %c9] : memref<1x2x2x4x81xbf16, #tpu.memory_space<vmem>>, vector<1x1x1x4x71xbf16>
    %19 = vector.shape_cast %18 : vector<1x1x1x4x71xbf16> to vector<4x71xbf16>
    %c24 = arith.constant 24 : index
    %c0_39 = arith.constant 0 : index
    %20 = vector.load %arg5[%c24, %c0_39] : memref<36x71xbf16, #tpu.memory_space<vmem>>, vector<4x71xbf16>
    tpu.vector_store %arg5[%c24, %c0_39], %19 {strides = array<i32>} : memref<36x71xbf16, #tpu.memory_space<vmem>>, vector<4x71xbf16>,
    %c0_40 = arith.constant 0 : index
    %c0_41 = arith.constant 0 : index
    %c1_42 = arith.constant 1 : index
    %c0_43 = arith.constant 0 : index
    %c9_44 = arith.constant 9 : index
    %21 = vector.load %arg1[%c0_40, %c0_41, %c1_42, %c0_43, %c9_44] : memref<1x2x2x4x81xbf16, #tpu.memory_space<vmem>>, vector<1x1x1x4x71xbf16>
    %22 = vector.shape_cast %21 : vector<1x1x1x4x71xbf16> to vector<4x71xbf16>
    %c28 = arith.constant 28 : index
    %c0_45 = arith.constant 0 : index
    %23 = vector.load %arg5[%c28, %c0_45] : memref<36x71xbf16, #tpu.memory_space<vmem>>, vector<4x71xbf16>
    tpu.vector_store %arg5[%c28, %c0_45], %22 {strides = array<i32>} : memref<36x71xbf16, #tpu.memory_space<vmem>>, vector<4x71xbf16>,
    %c0_46 = arith.constant 0 : index
    %c0_47 = arith.constant 0 : index
    %c0_48 = arith.constant 0 : index
    %c0_49 = arith.constant 0 : index
    %c10 = arith.constant 10 : index
    %24 = vector.load %arg1[%c0_46, %c0_47, %c0_48, %c0_49, %c10] : memref<1x2x2x4x81xbf16, #tpu.memory_space<vmem>>, vector<1x1x1x4x71xbf16>
    %25 = vector.shape_cast %24 : vector<1x1x1x4x71xbf16> to vector<4x71xbf16>
    %c32 = arith.constant 32 : index
    %c0_50 = arith.constant 0 : index
    %26 = vector.load %arg5[%c32, %c0_50] : memref<36x71xbf16, #tpu.memory_space<vmem>>, vector<4x71xbf16>
    tpu.vector_store %arg5[%c32, %c0_50], %25 {strides = array<i32>} : memref<36x71xbf16, #tpu.memory_space<vmem>>, vector<4x71xbf16>,
    %c0_51 = arith.constant 0 : index
    %c0_52 = arith.constant 0 : index
    %27 = vector.load %arg2[%c0_51, %c0_52] : memref<8x36xbf16, #tpu.memory_space<vmem>>, vector<8x36xbf16>
    %c0_53 = arith.constant 0 : index
    %c0_54 = arith.constant 0 : index
    %28 = vector.load %arg5[%c0_53, %c0_54] : memref<36x71xbf16, #tpu.memory_space<vmem>>, vector<36x71xbf16>
    %cst = arith.constant dense<0.000000e+00> : vector<8x71xf32>
    %29 = tpu.matmul %27, %28, %cst {dimension_numbers = #tpu.dot_dimension_numbers<[1], [0], [0], [1], [0, 0, 1, 1], [], []>} : vector<8x36xbf16>, vector<36x71xbf16>, vector<8x71xf32> -> vector<8x71xf32>
    %c0_55 = arith.constant 0 : index
    %c0_56 = arith.constant 0 : index
    %30 = vector.load %arg3[%c0_55, %c0_56] : memref<8x1xf32, #tpu.memory_space<vmem>>, vector<8x1xf32>
    %31 = vector.broadcast %30 : vector<8x1xf32> to vector<8x71xf32>
    %32 = arith.addf %29, %31 : vector<8x71xf32>
    %33 = vector.extract_strided_slice %32 {offsets = [0, 0], sizes = [8, 8], strides = [1, 1]} : vector<8x71xf32> to vector<8x8xf32>
    %c0_57 = arith.constant 0 : index
    %c0_58 = arith.constant 0 : index
    %c0_59 = arith.constant 0 : index
    %c0_60 = arith.constant 0 : index
    %34 = vector.load %arg4[%c0_57, %c0_58, %c0_59, %c0_60] : memref<1x8x8x8xf32, #tpu.memory_space<vmem>>, vector<1x8x1x8xf32>
    %35 = vector.shape_cast %34 : vector<1x8x1x8xf32> to vector<8x8xf32>
    %36 = vector.shape_cast %33 : vector<8x8xf32> to vector<1x8x1x8xf32>
    tpu.vector_store %arg4[%c0_57, %c0_58, %c0_59, %c0_60], %36 {strides = array<i32>} : memref<1x8x8x8xf32, #tpu.memory_space<vmem>>, vector<1x8x1x8xf32>,
    %37 = vector.extract_strided_slice %32 {offsets = [0, 9], sizes = [8, 8], strides = [1, 1]} : vector<8x71xf32> to vector<8x8xf32>
    %c0_61 = arith.constant 0 : index
    %c0_62 = arith.constant 0 : index
    %c1_63 = arith.constant 1 : index
    %c0_64 = arith.constant 0 : index
    %38 = vector.load %arg4[%c0_61, %c0_62, %c1_63, %c0_64] : memref<1x8x8x8xf32, #tpu.memory_space<vmem>>, vector<1x8x1x8xf32>
    %39 = vector.shape_cast %38 : vector<1x8x1x8xf32> to vector<8x8xf32>
    %40 = vector.shape_cast %37 : vector<8x8xf32> to vector<1x8x1x8xf32>
    tpu.vector_store %arg4[%c0_61, %c0_62, %c1_63, %c0_64], %40 {strides = array<i32>} : memref<1x8x8x8xf32, #tpu.memory_space<vmem>>, vector<1x8x1x8xf32>,
    %41 = vector.extract_strided_slice %32 {offsets = [0, 18], sizes = [8, 8], strides = [1, 1]} : vector<8x71xf32> to vector<8x8xf32>
    %c0_65 = arith.constant 0 : index
    %c0_66 = arith.constant 0 : index
    %c2 = arith.constant 2 : index
    %c0_67 = arith.constant 0 : index
    %42 = vector.load %arg4[%c0_65, %c0_66, %c2, %c0_67] : memref<1x8x8x8xf32, #tpu.memory_space<vmem>>, vector<1x8x1x8xf32>
    %43 = vector.shape_cast %42 : vector<1x8x1x8xf32> to vector<8x8xf32>
    %44 = vector.shape_cast %41 : vector<8x8xf32> to vector<1x8x1x8xf32>
    tpu.vector_store %arg4[%c0_65, %c0_66, %c2, %c0_67], %44 {strides = array<i32>} : memref<1x8x8x8xf32, #tpu.memory_space<vmem>>, vector<1x8x1x8xf32>,
    %45 = vector.extract_strided_slice %32 {offsets = [0, 27], sizes = [8, 8], strides = [1, 1]} : vector<8x71xf32> to vector<8x8xf32>
    %c0_68 = arith.constant 0 : index
    %c0_69 = arith.constant 0 : index
    %c3 = arith.constant 3 : index
    %c0_70 = arith.constant 0 : index
    %46 = vector.load %arg4[%c0_68, %c0_69, %c3, %c0_70] : memref<1x8x8x8xf32, #tpu.memory_space<vmem>>, vector<1x8x1x8xf32>
    %47 = vector.shape_cast %46 : vector<1x8x1x8xf32> to vector<8x8xf32>
    %48 = vector.shape_cast %45 : vector<8x8xf32> to vector<1x8x1x8xf32>
    tpu.vector_store %arg4[%c0_68, %c0_69, %c3, %c0_70], %48 {strides = array<i32>} : memref<1x8x8x8xf32, #tpu.memory_space<vmem>>, vector<1x8x1x8xf32>,
    %49 = vector.extract_strided_slice %32 {offsets = [0, 36], sizes = [8, 8], strides = [1, 1]} : vector<8x71xf32> to vector<8x8xf32>
    %c0_71 = arith.constant 0 : index
    %c0_72 = arith.constant 0 : index
    %c4_73 = arith.constant 4 : index
    %c0_74 = arith.constant 0 : index
    %50 = vector.load %arg4[%c0_71, %c0_72, %c4_73, %c0_74] : memref<1x8x8x8xf32, #tpu.memory_space<vmem>>, vector<1x8x1x8xf32>
    %51 = vector.shape_cast %50 : vector<1x8x1x8xf32> to vector<8x8xf32>
    %52 = vector.shape_cast %49 : vector<8x8xf32> to vector<1x8x1x8xf32>
    tpu.vector_store %arg4[%c0_71, %c0_72, %c4_73, %c0_74], %52 {strides = array<i32>} : memref<1x8x8x8xf32, #tpu.memory_space<vmem>>, vector<1x8x1x8xf32>,
    %53 = vector.extract_strided_slice %32 {offsets = [0, 45], sizes = [8, 8], strides = [1, 1]} : vector<8x71xf32> to vector<8x8xf32>
    %c0_75 = arith.constant 0 : index
    %c0_76 = arith.constant 0 : index
    %c5 = arith.constant 5 : index
    %c0_77 = arith.constant 0 : index
    %54 = vector.load %arg4[%c0_75, %c0_76, %c5, %c0_77] : memref<1x8x8x8xf32, #tpu.memory_space<vmem>>, vector<1x8x1x8xf32>
    %55 = vector.shape_cast %54 : vector<1x8x1x8xf32> to vector<8x8xf32>
    %56 = vector.shape_cast %53 : vector<8x8xf32> to vector<1x8x1x8xf32>
    tpu.vector_store %arg4[%c0_75, %c0_76, %c5, %c0_77], %56 {strides = array<i32>} : memref<1x8x8x8xf32, #tpu.memory_space<vmem>>, vector<1x8x1x8xf32>,
    %57 = vector.extract_strided_slice %32 {offsets = [0, 54], sizes = [8, 8], strides = [1, 1]} : vector<8x71xf32> to vector<8x8xf32>
    %c0_78 = arith.constant 0 : index
    %c0_79 = arith.constant 0 : index
    %c6 = arith.constant 6 : index
    %c0_80 = arith.constant 0 : index
    %58 = vector.load %arg4[%c0_78, %c0_79, %c6, %c0_80] : memref<1x8x8x8xf32, #tpu.memory_space<vmem>>, vector<1x8x1x8xf32>
    %59 = vector.shape_cast %58 : vector<1x8x1x8xf32> to vector<8x8xf32>
    %60 = vector.shape_cast %57 : vector<8x8xf32> to vector<1x8x1x8xf32>
    tpu.vector_store %arg4[%c0_78, %c0_79, %c6, %c0_80], %60 {strides = array<i32>} : memref<1x8x8x8xf32, #tpu.memory_space<vmem>>, vector<1x8x1x8xf32>,
    %61 = vector.extract_strided_slice %32 {offsets = [0, 63], sizes = [8, 8], strides = [1, 1]} : vector<8x71xf32> to vector<8x8xf32>
    %c0_81 = arith.constant 0 : index
    %c0_82 = arith.constant 0 : index
    %c7 = arith.constant 7 : index
    %c0_83 = arith.constant 0 : index
    %62 = vector.load %arg4[%c0_81, %c0_82, %c7, %c0_83] : memref<1x8x8x8xf32, #tpu.memory_space<vmem>>, vector<1x8x1x8xf32>
    %63 = vector.shape_cast %62 : vector<1x8x1x8xf32> to vector<8x8xf32>
    %64 = vector.shape_cast %61 : vector<8x8xf32> to vector<1x8x1x8xf32>
    tpu.vector_store %arg4[%c0_81, %c0_82, %c7, %c0_83], %64 {strides = array<i32>} : memref<1x8x8x8xf32, #tpu.memory_space<vmem>>, vector<1x8x1x8xf32>,
    return
  }
  func.func @transform_0(%arg0: i32) -> (i32, i32, i32, i32, i32) {
    %c0_i32 = arith.constant 0 : i32
    %c0_i32_0 = arith.constant 0 : i32
    %c0_i32_1 = arith.constant 0 : i32
    %c0_i32_2 = arith.constant 0 : i32
    %c0_i32_3 = arith.constant 0 : i32
    return %arg0, %c0_i32, %c0_i32_0, %c0_i32_1, %c0_i32_2 : i32, i32, i32, i32, i32
  }
  func.func @transform_1(%arg0: i32) -> (i32, i32) {
    %c0_i32 = arith.constant 0 : i32
    %c0_i32_0 = arith.constant 0 : i32
    %c0_i32_1 = arith.constant 0 : i32
    return %c0_i32, %c0_i32_0 : i32, i32
  }
  func.func @transform_2(%arg0: i32) -> (i32, i32) {
    %c0_i32 = arith.constant 0 : i32
    %c0_i32_0 = arith.constant 0 : i32
    %c0_i32_1 = arith.constant 0 : i32
    return %c0_i32, %c0_i32_0 : i32, i32
  }
  func.func @transform_3(%arg0: i32) -> (i32, i32, i32, i32) {
    %c0_i32 = arith.constant 0 : i32
    %c0_i32_0 = arith.constant 0 : i32
    %c0_i32_1 = arith.constant 0 : i32
    %c0_i32_2 = arith.constant 0 : i32
    return %arg0, %c0_i32, %c0_i32_0, %c0_i32_1 : i32, i32, i32, i32
  }
}

</mosaic_0001>

<llo_original>
// kernel: conv_layer_forward.1
$region0: #{conv_layer_forward.1}
  #allocation0 [shape = 'u32[]', space=smem, size = 0x4, offset = 0x4, fixed_abs, tag = 'smem constant byte address 0x4 - core index']
  #allocation1 [shape = 'u32[72,128]{1,0:T(1,128)}', space=vmem, size = 0x9000, scoped, tag = 'internal scratch']
  #allocation2 [shape = 'bf16[36,71]{1,0:T(8,128)(2,1)}', space=vmem, size = 0x2800, scoped, tag = 'scratch operand']
  %s0 = inlined_call_operand.vmem [shape: bf16[2,2,2,4,81], index: 0, kind: input, shape index: {}]
  %s1 = inlined_call_operand.vmem [shape: bf16[8,36], index: 1, kind: input, shape index: {}]
  %s2 = inlined_call_operand.vmem [shape: f32[8,1], index: 2, kind: input, shape index: {}]
  %s3 = inlined_call_operand.hbm [shape: f32[2,8,8,8], index: 3, kind: output, shape index: {}]
  %s4 = sld [smem:[#allocation0]]
  $region45: #{conv_layer_forward.1} parent=0
    _
  %s6 = ssub.s32 1, %s4
  %s7 = scalar_select 0, %s6, %s4
  $region1: #{conv_layer_forward.1} parent=0
    #allocation3 [shape = 'u8[65536]{0}', space=vmem, size = 0x10000, scoped, tag = 'output window, operand 0']
    #allocation4 [shape = 's32[2]{0}', space=sflag, size = 0x8, scoped, tag = 'scoped memory for conv_layer_forward.1']
    %8 = vsyncpa [#allocation4], 0
    %s9 = scalar_lea.sflag [#allocation4], 1
    %10 = vsyncpa %s9, 0
    loop: start=0, step=1, limit=4
    $region2: #{conv_layer_forward.1} parent=1 // loop_pre_header
      _
    $region3: #{conv_layer_forward.1} parent=1 // loop_header
      %s12 = sphi 0, %s16
      %p13 = scmp.ge.s32.totalorder %s12, 4
      %s22 = sphi 0, %s24
      %s25 = sphi 0, %s22
      %s26 = sphi 0, %s25
      %s42 = sphi 0, %s26
      %s46 = sphi 0, %s46
      %s48 = sphi 0, %s46
      %s49 = sphi 0, %s48
      %s63 = sphi 0, %s49
      %s67 = sphi 0, %s67
      %s69 = sphi 0, %s67
      %s70 = sphi 0, %s69
      %s84 = sphi 0, %s70
      %s90 = sphi 0, %s92
      %s93 = sphi 0, %s90
      %s94 = sphi 0, %s93
      %s110 = sphi 0, %s94
    $region4: #{conv_layer_forward.1} parent=1 // loop_header_branch
      %15 = sbr.rel (%p13) target = $region8
    $region5: #{conv_layer_forward.1} parent=1 // loop_body
      %s17 = ssub.s32 %s12, 1
      %s18 = ssub.s32 %s12, 2
      %s19 = sadd.s32 %s12, 1
      %s20 = ssub.s32 %s12, %s19
      %p21 = scmp.eq.s32.totalorder %s20, 0
      %s23 = sadd.s32 %s22, 1
      %s24 = scalar_select %p21, %s22, %s23
      %p27 = pneg %p21
      %p28 = scmp.eq.s32.totalorder %s12, 1
      %p29 = por %p27, %p28
      %p30 = scmp.ne.s32.totalorder %s22, %s25
      %p31 = scmp.eq.s32.totalorder %s12, 0
      %p32 = por %p30, %p31
      %p33 = scmp.ne.s32.totalorder %s22, %s25
      %p34 = scmp.eq.s32.totalorder %s17, 1
      %p35 = por %p33, %p34
      %p36 = scmp.ne.s32.totalorder %s25, %s26
      %p37 = scmp.eq.s32.totalorder %s17, 0
      %p38 = por %p36, %p37
      %p39 = scmp.ne.s32.totalorder %s25, %s26
      %p40 = scmp.eq.s32.totalorder %s18, 1
      %p41 = por %p39, %p40
      %p43 = scmp.ne.s32.totalorder %s26, %s42
      %p44 = scmp.eq.s32.totalorder %s18, 0
      %p45 = por %p43, %p44
      %s47 = sadd.s32 %s46, 1
      %p50 = scmp.eq.s32.totalorder %s12, 1
      %p51 = scmp.ne.s32.totalorder %s46, %s48
      %p52 = scmp.eq.s32.totalorder %s12, 0
      %p53 = por %p51, %p52
      %p54 = scmp.ne.s32.totalorder %s46, %s48
      %p55 = scmp.eq.s32.totalorder %s17, 1
      %p56 = por %p54, %p55
      %p57 = scmp.ne.s32.totalorder %s48, %s49
      %p58 = scmp.eq.s32.totalorder %s17, 0
      %p59 = por %p57, %p58
      %p60 = scmp.ne.s32.totalorder %s48, %s49
      %p61 = scmp.eq.s32.totalorder %s18, 1
      %p62 = por %p60, %p61
      %p64 = scmp.ne.s32.totalorder %s49, %s63
      %p65 = scmp.eq.s32.totalorder %s18, 0
      %p66 = por %p64, %p65
      %s68 = sadd.s32 %s67, 1
      %p71 = scmp.eq.s32.totalorder %s12, 1
      %p72 = scmp.ne.s32.totalorder %s67, %s69
      %p73 = scmp.eq.s32.totalorder %s12, 0
      %p74 = por %p72, %p73
      %p75 = scmp.ne.s32.totalorder %s67, %s69
      %p76 = scmp.eq.s32.totalorder %s17, 1
      %p77 = por %p75, %p76
      %p78 = scmp.ne.s32.totalorder %s69, %s70
      %p79 = scmp.eq.s32.totalorder %s17, 0
      %p80 = por %p78, %p79
      %p81 = scmp.ne.s32.totalorder %s69, %s70
      %p82 = scmp.eq.s32.totalorder %s18, 1
      %p83 = por %p81, %p82
      %p85 = scmp.ne.s32.totalorder %s70, %s84
      %p86 = scmp.eq.s32.totalorder %s18, 0
      %p87 = por %p85, %p86
      %s88 = ssub.s32 %s12, %s19
      %p89 = scmp.eq.s32.totalorder %s88, 0
      %s91 = sadd.s32 %s90, 1
      %s92 = scalar_select %p89, %s90, %s91
      %p95 = pneg %p89
      %p96 = scmp.eq.s32.totalorder %s12, 1
      %p97 = por %p95, %p96
      %p98 = scmp.ne.s32.totalorder %s90, %s93
      %p99 = scmp.eq.s32.totalorder %s12, 0
      %p100 = por %p98, %p99
      %p101 = scmp.ne.s32.totalorder %s90, %s93
      %p102 = scmp.eq.s32.totalorder %s17, 1
      %p103 = por %p101, %p102
      %p104 = scmp.ne.s32.totalorder %s93, %s94
      %p105 = scmp.eq.s32.totalorder %s17, 0
      %p106 = por %p104, %p105
      %p107 = scmp.ne.s32.totalorder %s93, %s94
      %p108 = scmp.eq.s32.totalorder %s18, 1
      %p109 = por %p107, %p108
      %p111 = scmp.ne.s32.totalorder %s94, %s110
      %p112 = scmp.eq.s32.totalorder %s18, 0
      %p113 = por %p111, %p112
      %p114 = scmp.le.s32.totalorder 1, %s12
      %p115 = scmp.lt.s32.totalorder %s12, 3
      %p116 = pnand %p114, %p115
      %p117 = pneg %p116
      // Predicated region
      $region9: #{conv_layer_forward.1} parent=5 // pred_check
        _
      $region10: #{conv_layer_forward.1} parent=5 // pred_check_branch
        %119 = sbr.rel (%p116) target = $region12
      $region11: #{conv_layer_forward.1} parent=5 // pred_region
        %s120 = ssub.s32 %s12, 1
        // Predicated region
        $region13: #{conv_layer_forward.1} parent=11 // pred_check
          %p121 = pneg %p59
        $region14: #{conv_layer_forward.1} parent=11 // pred_check_branch
          %123 = sbr.rel (%p121) target = $region16
        $region15: #{conv_layer_forward.1} parent=11 // pred_region
          _
        $region16: #{conv_layer_forward.1} parent=11 // pred_fallthru
          _
        // Predicated region
        $region17: #{conv_layer_forward.1} parent=11 // pred_check
          %p124 = pneg %p80
        $region18: #{conv_layer_forward.1} parent=11 // pred_check_branch
          %126 = sbr.rel (%p124) target = $region20
        $region19: #{conv_layer_forward.1} parent=11 // pred_region
          _
        $region20: #{conv_layer_forward.1} parent=11 // pred_fallthru
          _
      $region12: #{conv_layer_forward.1} parent=5 // pred_fallthru
        _
      %p127 = scmp.lt.s32.totalorder %s12, 2
      // Predicated region
      $region21: #{conv_layer_forward.1} parent=5 // pred_check
        %p128 = pneg %p127
      $region22: #{conv_layer_forward.1} parent=5 // pred_check_branch
        %130 = sbr.rel (%p128) target = $region24
      $region23: #{conv_layer_forward.1} parent=5 // pred_region
        // Predicated region
        $region25: #{conv_layer_forward.1} parent=23 // pred_check
          %p131 = pneg %p32
        $region26: #{conv_layer_forward.1} parent=23 // pred_check_branch
          %133 = sbr.rel (%p131) target = $region28
        $region27: #{conv_layer_forward.1} parent=23 // pred_region
          %p134 = scmp.lt.s32.totalorder %s12, 1
          %s135 = scalar_select %p134, %s12, 1
          %s136 = smul.addr %s135, 4
          %s137 = smul.addr %s136, 2
          %s138 = scalar_lea.vmem %s0, %s137
        $region28: #{conv_layer_forward.1} parent=23 // pred_fallthru
          _
      $region24: #{conv_layer_forward.1} parent=5 // pred_fallthru
        _
      %p139 = scmp.le.s32.totalorder 1, %s12
      %p140 = scmp.lt.s32.totalorder %s12, 3
      %p141 = pnand %p139, %p140
      %p142 = pneg %p141
      // Predicated region
      $region29: #{conv_layer_forward.1} parent=5 // pred_check
        _
      $region30: #{conv_layer_forward.1} parent=5 // pred_check_branch
        %144 = sbr.rel (%p141) target = $region32
      $region31: #{conv_layer_forward.1} parent=5 // pred_region
        %s145 = ssub.s32 %s12, 1
        %p146 = scmp.lt.s32.totalorder %s17, 1
        %s147 = scalar_select %p146, %s17, 1
        %s148 = smul.addr %s147, 4
        %s149 = smul.addr %s148, 2
        %s150 = scalar_lea.vmem %s0, %s149
        %p151 = pneg %p38
        %p152 = pneg %p35
        %p153 = pneg %p59
        %p154 = pneg %p56
        %p155 = pneg %p80
        %p156 = pneg %p77
        %p157 = pneg %p106
        %p158 = pneg %p103
        %s159 = sand.u32 %s93, 1
        %s160 = scalar_lea.sflag [#allocation4], %s159
        %s161 = sand.u32 %s93, 1
        %s162 = smul.addr %s161, 64
        %s163 = scalar_lea.vmem [#allocation3], %s162
        %p164 = scmp.lt.s32.totalorder %s17, 1
        %s165 = scalar_select %p164, %s17, 1
        %s166 = smul.addr %s165, 4
        %s167 = smul.addr %s166, 2
        %s168 = scalar_lea.vmem %s0, %s167
        %v170 = vld [vmem:[%s168] sm:$0x3]
        %vm171 = vcmask 574464
        %172 = vst.msk [vmem:[#allocation2] sm:$0x3] %vm171, %v170
        %s173 = scalar_lea.vmem %s168, 2
        %v174 = vld [vmem:[%s173] sm:$0x3]
        %s176 = scalar_lea.vmem [#allocation1], 1
        %177 = vst [vmem:[%s176] ss:$2 sm:$0xff] %v174
        %v178 = vld.sshfl [vmem:[#allocation1] sm:$0xff pattern:$0x75643120]
        %vm180 = vcmask 576514
        %181 = vst.msk [vmem:[#allocation2] sm:$0xc] %vm180, %v178
        %v182 = vld [vmem:[%s168] sm:$0x3]
        %184 = vst [vmem:[#allocation1] ss:$2 sm:$0xff] %v182
        %v185 = vld.sshfl [vmem:[#allocation1] sm:$0xff pattern:$0x75643120]
        %187 = vrot.lane.b32.xlu0 %v185, 127
        %v188 = vpop.permute.xlu0 %187
        %190 = vst.msk [vmem:[#allocation2 + $0x4] sm:$0x3] %vm171, %v188
        %s191 = scalar_lea.vmem %s168, 4
        %v192 = vld [vmem:[%s191] sm:$0x3]
        %s194 = scalar_lea.vmem [#allocation1], 1
        %195 = vst [vmem:[%s194] ss:$2 sm:$0xff] %v192
        %v196 = vld.sshfl [vmem:[#allocation1] sm:$0xff pattern:$0x75643120]
        %198 = vst.msk [vmem:[#allocation2 + $0x4] sm:$0xc] %vm180, %v196
        %s199 = scalar_lea.vmem %s168, 6
        %v200 = vld [vmem:[%s199] sm:$0x3]
        %201 = vst.msk [vmem:[#allocation2 + $0x8] sm:$0x3] %vm171, %v200
        %v202 = vld [vmem:[%s191] sm:$0x3]
        %s204 = scalar_lea.vmem [#allocation1], 1
        %205 = vst [vmem:[%s204] ss:$2 sm:$0xff] %v202
        %v206 = vld.sshfl [vmem:[#allocation1] sm:$0xff pattern:$0x75643120]
        %208 = vrot.lane.b32.xlu0 %v206, 127
        %v209 = vpop.permute.xlu0 %208
        %211 = vst.msk [vmem:[#allocation2 + $0x8] sm:$0xc] %vm180, %v209
        %v212 = vld [vmem:[%s168] sm:$0x3]
        %214 = vst [vmem:[#allocation1] ss:$2 sm:$0xff] %v212
        %v215 = vld.sshfl [vmem:[#allocation1] sm:$0xff pattern:$0x75643120]
        %217 = vrot.lane.b32.xlu0 %v215, 119
        %v218 = vpop.permute.xlu0 %217
        %220 = vst.msk [vmem:[#allocation2 + $0xc] sm:$0x3] %vm171, %v218
        %v221 = vld [vmem:[%s173] sm:$0x3]
        %s223 = scalar_lea.vmem [#allocation1], 1
        %224 = vst [vmem:[%s223] ss:$2 sm:$0xff] %v221
        %v225 = vld.sshfl [vmem:[#allocation1] sm:$0xff pattern:$0x75643120]
        %227 = vrot.lane.b32.xlu0 %v225, 119
        %v228 = vpop.permute.xlu0 %227
        %230 = vst.msk [vmem:[#allocation2 + $0xc] sm:$0xc] %vm180, %v228
        %v231 = vld [vmem:[%s168] sm:$0x3]
        %233 = vst [vmem:[#allocation1] ss:$2 sm:$0xff] %v231
        %v234 = vld.sshfl [vmem:[#allocation1] sm:$0xff pattern:$0x75643120]
        %236 = vrot.lane.b32.xlu0 %v234, 118
        %v237 = vpop.permute.xlu0 %236
        %239 = vst.msk [vmem:[#allocation2 + $0x10] sm:$0x3] %vm171, %v237
        %v240 = vld [vmem:[%s1] sm:$0xf]
        %v241 = vld [vmem:[#allocation2] sm:$0xf]
        %v242 = vld [vmem:[#allocation2 + $0x4] sm:$0xf]
        %v243 = vld [vmem:[#allocation2 + $0x8] sm:$0xf]
        %v244 = vld [vmem:[#allocation2 + $0xc] sm:$0xf]
        %v245 = vld [vmem:[#allocation2 + $0x10] sm:$0x3]
        %v246 = vld [vmem:[%s2] sm:$0xff]
        %248 = vset.pattern.permute.xlu0 0
        %249 = vperm.xlu0 %248, %v246
        %v250 = vpop.permute.xlu0 %249
        %v257 = vunpack.c.l.b16 %v241
        %v258 = vunpack.c.l.b16 %v242
        %v259 = vunpack.c.l.b16 %v243
        %v260 = vunpack.c.l.b16 %v244
        %v261 = vunpack.c.l.b16 %v245
        %v262 = vpack.c.b16 %v258, %v257
        %v263 = vpack.c.b16 %v260, %v259
        %v264 = vpack.c.b16 %v261, %v261
        %vm267 = vcmask 293888
        %v269 = vsel %vm267, %v240, 0
        %vm271 = vcmask 1041408
        %v273 = vsel %vm271, %v264, 0
        %275 = vmatpush.bf16.msra.mxu0 0
        %276 = vmatpush.bf16.msra.mxu0 0
        %277 = vmatpush.bf16.msra.mxu0 0
        %278 = vmatpush.bf16.msra.mxu0 0
        %279 = vmatpush.bf16.msra.mxu0 0
        %280 = vmatpush.bf16.msra.mxu0 %v273
        %281 = vmatpush.bf16.msra.mxu0 %v263
        %282 = vmatpush.bf16.msra.mxu0 %v262
        %283 = vmatmul.bf16.gmra.mxu0 %v269
        %v284 = vpop.f32.mrf.mxu0
        %v285 = vadd.f32 %v250, %v284
        %v286 = vpop.f32.mrf.mxu0
        %287 = vdwg.mxu0
        %v289 = vrot.slane %v285, 1
        %v290 = vrot.slane %v285, 2
        %v291 = vrot.slane %v285, 3
        %v292 = vrot.slane %v285, 4
        %v293 = vrot.slane %v285, 5
        %v294 = vrot.slane %v285, 6
        %v295 = vrot.slane %v285, 7
        %vm303 = vcmask 57344
        %304 = vst.msk [vmem:[%s163] sm:$0x1] %vm303, %v285
        %305 = vst.msk [vmem:[%s163 + $0x8] sm:$0x1] %vm303, %v289
        %306 = vst.msk [vmem:[%s163 + $0x10] sm:$0x1] %vm303, %v290
        %307 = vst.msk [vmem:[%s163 + $0x18] sm:$0x1] %vm303, %v291
        %308 = vst.msk [vmem:[%s163 + $0x20] sm:$0x1] %vm303, %v292
        %309 = vst.msk [vmem:[%s163 + $0x28] sm:$0x1] %vm303, %v293
        %310 = vst.msk [vmem:[%s163 + $0x30] sm:$0x1] %vm303, %v294
        %311 = vst.msk [vmem:[%s163 + $0x38] sm:$0x1] %vm303, %v295
        %v312 = vperm.slane %v285, 0
        %v313 = vperm.slane %v289, 0
        %v314 = vperm.slane %v290, 0
        %v315 = vperm.slane %v291, 0
        %v316 = vperm.slane %v292, 0
        %v317 = vperm.slane %v293, 0
        %v318 = vperm.slane %v294, 0
        %v319 = vperm.slane %v295, 0
        %320 = vrot.lane.b32.xlu0 %v312, 119
        %v321 = vpop.permute.xlu0 %320
        %322 = vrot.lane.b32.xlu0 %v313, 119
        %v323 = vpop.permute.xlu0 %322
        %324 = vrot.lane.b32.xlu0 %v314, 119
        %v325 = vpop.permute.xlu0 %324
        %326 = vrot.lane.b32.xlu0 %v315, 119
        %v327 = vpop.permute.xlu0 %326
        %328 = vrot.lane.b32.xlu0 %v316, 119
        %v329 = vpop.permute.xlu0 %328
        %330 = vrot.lane.b32.xlu0 %v317, 119
        %v331 = vpop.permute.xlu0 %330
        %332 = vrot.lane.b32.xlu0 %v318, 119
        %v333 = vpop.permute.xlu0 %332
        %334 = vrot.lane.b32.xlu0 %v319, 119
        %v335 = vpop.permute.xlu0 %334
        %344 = vst.msk [vmem:[%s163 + $0x1] sm:$0x1] %vm303, %v321
        %345 = vst.msk [vmem:[%s163 + $0x9] sm:$0x1] %vm303, %v323
        %346 = vst.msk [vmem:[%s163 + $0x11] sm:$0x1] %vm303, %v325
        %347 = vst.msk [vmem:[%s163 + $0x19] sm:$0x1] %vm303, %v327
        %348 = vst.msk [vmem:[%s163 + $0x21] sm:$0x1] %vm303, %v329
        %349 = vst.msk [vmem:[%s163 + $0x29] sm:$0x1] %vm303, %v331
        %350 = vst.msk [vmem:[%s163 + $0x31] sm:$0x1] %vm303, %v333
        %351 = vst.msk [vmem:[%s163 + $0x39] sm:$0x1] %vm303, %v335
        %352 = vrot.lane.b32.xlu0 %v312, 110
        %v353 = vpop.permute.xlu0 %352
        %354 = vrot.lane.b32.xlu0 %v313, 110
        %v355 = vpop.permute.xlu0 %354
        %356 = vrot.lane.b32.xlu0 %v314, 110
        %v357 = vpop.permute.xlu0 %356
        %358 = vrot.lane.b32.xlu0 %v315, 110
        %v359 = vpop.permute.xlu0 %358
        %360 = vrot.lane.b32.xlu0 %v316, 110
        %v361 = vpop.permute.xlu0 %360
        %362 = vrot.lane.b32.xlu0 %v317, 110
        %v363 = vpop.permute.xlu0 %362
        %364 = vrot.lane.b32.xlu0 %v318, 110
        %v365 = vpop.permute.xlu0 %364
        %366 = vrot.lane.b32.xlu0 %v319, 110
        %v367 = vpop.permute.xlu0 %366
        %376 = vst.msk [vmem:[%s163 + $0x2] sm:$0x1] %vm303, %v353
        %377 = vst.msk [vmem:[%s163 + $0xa] sm:$0x1] %vm303, %v355
        %378 = vst.msk [vmem:[%s163 + $0x12] sm:$0x1] %vm303, %v357
        %379 = vst.msk [vmem:[%s163 + $0x1a] sm:$0x1] %vm303, %v359
        %380 = vst.msk [vmem:[%s163 + $0x22] sm:$0x1] %vm303, %v361
        %381 = vst.msk [vmem:[%s163 + $0x2a] sm:$0x1] %vm303, %v363
        %382 = vst.msk [vmem:[%s163 + $0x32] sm:$0x1] %vm303, %v365
        %383 = vst.msk [vmem:[%s163 + $0x3a] sm:$0x1] %vm303, %v367
        %384 = vrot.lane.b32.xlu0 %v312, 101
        %v385 = vpop.permute.xlu0 %384
        %386 = vrot.lane.b32.xlu0 %v313, 101
        %v387 = vpop.permute.xlu0 %386
        %388 = vrot.lane.b32.xlu0 %v314, 101
        %v389 = vpop.permute.xlu0 %388
        %390 = vrot.lane.b32.xlu0 %v315, 101
        %v391 = vpop.permute.xlu0 %390
        %392 = vrot.lane.b32.xlu0 %v316, 101
        %v393 = vpop.permute.xlu0 %392
        %394 = vrot.lane.b32.xlu0 %v317, 101
        %v395 = vpop.permute.xlu0 %394
        %396 = vrot.lane.b32.xlu0 %v318, 101
        %v397 = vpop.permute.xlu0 %396
        %398 = vrot.lane.b32.xlu0 %v319, 101
        %v399 = vpop.permute.xlu0 %398
        %408 = vst.msk [vmem:[%s163 + $0x3] sm:$0x1] %vm303, %v385
        %409 = vst.msk [vmem:[%s163 + $0xb] sm:$0x1] %vm303, %v387
        %410 = vst.msk [vmem:[%s163 + $0x13] sm:$0x1] %vm303, %v389
        %411 = vst.msk [vmem:[%s163 + $0x1b] sm:$0x1] %vm303, %v391
        %412 = vst.msk [vmem:[%s163 + $0x23] sm:$0x1] %vm303, %v393
        %413 = vst.msk [vmem:[%s163 + $0x2b] sm:$0x1] %vm303, %v395
        %414 = vst.msk [vmem:[%s163 + $0x33] sm:$0x1] %vm303, %v397
        %415 = vst.msk [vmem:[%s163 + $0x3b] sm:$0x1] %vm303, %v399
        %416 = vrot.lane.b32.xlu0 %v312, 92
        %v417 = vpop.permute.xlu0 %416
        %418 = vrot.lane.b32.xlu0 %v313, 92
        %v419 = vpop.permute.xlu0 %418
        %420 = vrot.lane.b32.xlu0 %v314, 92
        %v421 = vpop.permute.xlu0 %420
        %422 = vrot.lane.b32.xlu0 %v315, 92
        %v423 = vpop.permute.xlu0 %422
        %424 = vrot.lane.b32.xlu0 %v316, 92
        %v425 = vpop.permute.xlu0 %424
        %426 = vrot.lane.b32.xlu0 %v317, 92
        %v427 = vpop.permute.xlu0 %426
        %428 = vrot.lane.b32.xlu0 %v318, 92
        %v429 = vpop.permute.xlu0 %428
        %430 = vrot.lane.b32.xlu0 %v319, 92
        %v431 = vpop.permute.xlu0 %430
        %440 = vst.msk [vmem:[%s163 + $0x4] sm:$0x1] %vm303, %v417
        %441 = vst.msk [vmem:[%s163 + $0xc] sm:$0x1] %vm303, %v419
        %442 = vst.msk [vmem:[%s163 + $0x14] sm:$0x1] %vm303, %v421
        %443 = vst.msk [vmem:[%s163 + $0x1c] sm:$0x1] %vm303, %v423
        %444 = vst.msk [vmem:[%s163 + $0x24] sm:$0x1] %vm303, %v425
        %445 = vst.msk [vmem:[%s163 + $0x2c] sm:$0x1] %vm303, %v427
        %446 = vst.msk [vmem:[%s163 + $0x34] sm:$0x1] %vm303, %v429
        %447 = vst.msk [vmem:[%s163 + $0x3c] sm:$0x1] %vm303, %v431
        %448 = vrot.lane.b32.xlu0 %v312, 83
        %v449 = vpop.permute.xlu0 %448
        %450 = vrot.lane.b32.xlu0 %v313, 83
        %v451 = vpop.permute.xlu0 %450
        %452 = vrot.lane.b32.xlu0 %v314, 83
        %v453 = vpop.permute.xlu0 %452
        %454 = vrot.lane.b32.xlu0 %v315, 83
        %v455 = vpop.permute.xlu0 %454
        %456 = vrot.lane.b32.xlu0 %v316, 83
        %v457 = vpop.permute.xlu0 %456
        %458 = vrot.lane.b32.xlu0 %v317, 83
        %v459 = vpop.permute.xlu0 %458
        %460 = vrot.lane.b32.xlu0 %v318, 83
        %v461 = vpop.permute.xlu0 %460
        %462 = vrot.lane.b32.xlu0 %v319, 83
        %v463 = vpop.permute.xlu0 %462
        %472 = vst.msk [vmem:[%s163 + $0x5] sm:$0x1] %vm303, %v449
        %473 = vst.msk [vmem:[%s163 + $0xd] sm:$0x1] %vm303, %v451
        %474 = vst.msk [vmem:[%s163 + $0x15] sm:$0x1] %vm303, %v453
        %475 = vst.msk [vmem:[%s163 + $0x1d] sm:$0x1] %vm303, %v455
        %476 = vst.msk [vmem:[%s163 + $0x25] sm:$0x1] %vm303, %v457
        %477 = vst.msk [vmem:[%s163 + $0x2d] sm:$0x1] %vm303, %v459
        %478 = vst.msk [vmem:[%s163 + $0x35] sm:$0x1] %vm303, %v461
        %479 = vst.msk [vmem:[%s163 + $0x3d] sm:$0x1] %vm303, %v463
        %480 = vrot.lane.b32.xlu0 %v312, 74
        %v481 = vpop.permute.xlu0 %480
        %482 = vrot.lane.b32.xlu0 %v313, 74
        %v483 = vpop.permute.xlu0 %482
        %484 = vrot.lane.b32.xlu0 %v314, 74
        %v485 = vpop.permute.xlu0 %484
        %486 = vrot.lane.b32.xlu0 %v315, 74
        %v487 = vpop.permute.xlu0 %486
        %488 = vrot.lane.b32.xlu0 %v316, 74
        %v489 = vpop.permute.xlu0 %488
        %490 = vrot.lane.b32.xlu0 %v317, 74
        %v491 = vpop.permute.xlu0 %490
        %492 = vrot.lane.b32.xlu0 %v318, 74
        %v493 = vpop.permute.xlu0 %492
        %494 = vrot.lane.b32.xlu0 %v319, 74
        %v495 = vpop.permute.xlu0 %494
        %504 = vst.msk [vmem:[%s163 + $0x6] sm:$0x1] %vm303, %v481
        %505 = vst.msk [vmem:[%s163 + $0xe] sm:$0x1] %vm303, %v483
        %506 = vst.msk [vmem:[%s163 + $0x16] sm:$0x1] %vm303, %v485
        %507 = vst.msk [vmem:[%s163 + $0x1e] sm:$0x1] %vm303, %v487
        %508 = vst.msk [vmem:[%s163 + $0x26] sm:$0x1] %vm303, %v489
        %509 = vst.msk [vmem:[%s163 + $0x2e] sm:$0x1] %vm303, %v491
        %510 = vst.msk [vmem:[%s163 + $0x36] sm:$0x1] %vm303, %v493
        %511 = vst.msk [vmem:[%s163 + $0x3e] sm:$0x1] %vm303, %v495
        %512 = vrot.lane.b32.xlu0 %v312, 65
        %v513 = vpop.permute.xlu0 %512
        %514 = vrot.lane.b32.xlu0 %v313, 65
        %v515 = vpop.permute.xlu0 %514
        %516 = vrot.lane.b32.xlu0 %v314, 65
        %v517 = vpop.permute.xlu0 %516
        %518 = vrot.lane.b32.xlu0 %v315, 65
        %v519 = vpop.permute.xlu0 %518
        %520 = vrot.lane.b32.xlu0 %v316, 65
        %v521 = vpop.permute.xlu0 %520
        %522 = vrot.lane.b32.xlu0 %v317, 65
        %v523 = vpop.permute.xlu0 %522
        %524 = vrot.lane.b32.xlu0 %v318, 65
        %v525 = vpop.permute.xlu0 %524
        %526 = vrot.lane.b32.xlu0 %v319, 65
        %v527 = vpop.permute.xlu0 %526
        %536 = vst.msk [vmem:[%s163 + $0x7] sm:$0x1] %vm303, %v513
        %537 = vst.msk [vmem:[%s163 + $0xf] sm:$0x1] %vm303, %v515
        %538 = vst.msk [vmem:[%s163 + $0x17] sm:$0x1] %vm303, %v517
        %539 = vst.msk [vmem:[%s163 + $0x1f] sm:$0x1] %vm303, %v519
        %540 = vst.msk [vmem:[%s163 + $0x27] sm:$0x1] %vm303, %v521
        %541 = vst.msk [vmem:[%s163 + $0x2f] sm:$0x1] %vm303, %v523
        %542 = vst.msk [vmem:[%s163 + $0x37] sm:$0x1] %vm303, %v525
        %543 = vst.msk [vmem:[%s163 + $0x3f] sm:$0x1] %vm303, %v527
        %s544 = sand.u32 %s93, 1
        %s545 = scalar_lea.sflag [#allocation4], %s544
        %s546 = sand.u32 %s93, 1
        %s547 = smul.addr %s546, 64
        %s548 = scalar_lea.vmem [#allocation3], %s547
        // Predicated region
        $region33: #{conv_layer_forward.1} parent=31 // pred_check
          %p549 = pneg %p103
        $region34: #{conv_layer_forward.1} parent=31 // pred_check_branch
          %551 = sbr.rel (%p549) target = $region36
        $region35: #{conv_layer_forward.1} parent=31 // pred_region
          %553 = vsyncadd %s545, 0
          %s554 = smul.addr %s17, 8
          %s555 = smul.addr %s554, 8
          %s556 = scalar_lea.hbm %s3, %s555
          %s557 = sshll.u32 %s548, 4
          %s558 = int_to_ptr.vmem [resolvable:$true] %s557
          %s559 = sshll.u32 %s556, 4
          %s560 = int_to_ptr.hbm [resolvable:$true] %s559
          %565 = dma.vmem_to_hbm [thread:$0]  %s558, 1024, %s560, %s545, 128, 128, 8
        $region36: #{conv_layer_forward.1} parent=31 // pred_fallthru
          _
      $region32: #{conv_layer_forward.1} parent=5 // pred_fallthru
        _
      %p566 = scmp.le.s32.totalorder 2, %s12
      // Predicated region
      $region37: #{conv_layer_forward.1} parent=5 // pred_check
        %p567 = pneg %p566
      $region38: #{conv_layer_forward.1} parent=5 // pred_check_branch
        %569 = sbr.rel (%p567) target = $region40
      $region39: #{conv_layer_forward.1} parent=5 // pred_region
        %s570 = ssub.s32 %s12, 2
        // Predicated region
        $region41: #{conv_layer_forward.1} parent=39 // pred_check
          %p571 = pneg %p109
        $region42: #{conv_layer_forward.1} parent=39 // pred_check_branch
          %573 = sbr.rel (%p571) target = $region44
        $region43: #{conv_layer_forward.1} parent=39 // pred_region
          %s574 = sand.u32 %s94, 1
          %s575 = scalar_lea.sflag [#allocation4], %s574
          %s576 = sand.u32 %s94, 1
          %s577 = smul.addr %s576, 64
          %s578 = scalar_lea.vmem [#allocation3], %s577
          %580 = dma.done %s575, 1024
        $region44: #{conv_layer_forward.1} parent=39 // pred_fallthru
          _
      $region40: #{conv_layer_forward.1} parent=5 // pred_fallthru
        _
    $region6: #{conv_layer_forward.1} parent=1 // loop_footer
      %s16 = sadd.s32 1, %s12
    $region7: #{conv_layer_forward.1} parent=1 // loop_footer_branch
      %11 = sbr.rel target = $region3
    $region8: #{conv_layer_forward.1} parent=1 // loop_exit
      _
    %581 = vsyncpa [#allocation4], 1
    %s582 = scalar_lea.sflag [#allocation4], 1
    %583 = vsyncpa %s582, 1

</llo_original>
